<compile_context>
chip_gen: v7x
topology: tpu7x:2x2x1
jax: 0.10.0
libtpu: 0.0.40
codegen_flags: <defaults>
</compile_context>

<pallas_src>
import functools

import jax
import jax.numpy as jnp
from jax import lax
from jax.experimental import pallas as pl
from jax.experimental.pallas import tpu as pltpu


def _round_up(v, m):
    return ((v + m - 1) // m) * m


def _attention_kernel(x_ref, w_ref, b_ref, ctx_ref, attw_ref,
                      m_sc, l_sc, acc_sc, p_sc, msnap_sc,
                      *, seq_len, block_t, num_t_blocks):
    ti = pl.program_id(1)
    bb, bt, dd = x_ref.shape
    ragged = (seq_len % block_t) != 0

    @pl.when(ti == 0)
    def _init():
        m_sc[...] = jnp.full_like(m_sc, -jnp.inf)
        l_sc[...] = jnp.zeros_like(l_sc)
        acc_sc[...] = jnp.zeros_like(acc_sc)

    x = x_ref[...]                                    # (Bt, Tt, D) native dtype
    w = w_ref[...]                                    # (1, D)      native dtype
    bias = b_ref[0]                                   # scalar (SMEM)

    # ---- D->1 score projection on the MXU (q = 1 batched matmul, f32 acc) ---
    w_b = jnp.broadcast_to(w.reshape(1, 1, dd), (bb, 1, dd))
    s3 = jnp.einsum('bqd,bkd->bqk', w_b, x,
                    preferred_element_type=jnp.float32)        # (Bt, 1, Tt)
    s = s3.reshape(bb, bt) + bias                              # (Bt, Tt) lane-dense

    # Padded time steps (host zero-pads x, so only the score needs masking).
    if ragged:
        t_idx = ti * block_t + lax.broadcasted_iota(jnp.int32, s.shape, 1)
        s = jnp.where(t_idx < seq_len, s, -jnp.inf)

    # ---- online softmax update (flash-attention style), lane-dense ----------
    m_prev = m_sc[...]                                         # (Bt, 1)
    m_new = jnp.maximum(m_prev, jnp.max(s, axis=1, keepdims=True))
    alpha = jnp.exp(m_prev - m_new)                            # (Bt, 1)
    p = jnp.exp(s - m_new)                                     # (Bt, Tt) f32
    l_sc[...] = alpha * l_sc[...] + jnp.sum(p, axis=1, keepdims=True)
    m_sc[...] = m_new

    # Stash unnormalized weights + running-max snapshot (rescale-only finalize,
    # no second exp pass over B*T elements).
    p_sc[ti] = p
    msnap_sc[ti] = m_new

    # ---- context accumulation on the MXU (contract over Tt, f32 acc) --------
    p3 = p.reshape(bb, 1, bt).astype(x.dtype)
    pv = jnp.einsum('bqk,bkd->bqd', p3, x,
                    preferred_element_type=jnp.float32)        # (Bt, 1, D)
    acc_sc[...] = alpha * acc_sc[...] + pv.reshape(bb, dd)

    # ---- finalize on the last time tile --------------------------------------
    @pl.when(ti == num_t_blocks - 1)
    def _finalize():
        l = l_sc[...]
        inv_l = pl.reciprocal(l, approx=True)                  # EUP (free-ish)
        inv_l = inv_l * (2.0 - l * inv_l)                      # Newton -> ~f32
        m_fin = m_sc[...]
        ctx_ref[...] = (acc_sc[...] * inv_l).astype(ctx_ref.dtype)

        def emit(j, off, width):
            # exact softmax weight = p * exp(m_snap - m_final) / l
            scale = jnp.exp(msnap_sc[j] - m_fin) * inv_l       # (Bt, 1)
            chunk = (p_sc[j] * scale).astype(attw_ref.dtype)   # (Bt, Tt)
            if width == block_t:
                attw_ref[:, pl.ds(off, block_t)] = chunk
            else:
                attw_ref[:, pl.ds(off, width)] = chunk[:, :width]

        n_full = num_t_blocks - (1 if ragged else 0)
        if n_full <= 8:                      # small: static unroll
            for j in range(n_full):
                emit(j, j * block_t, block_t)
        else:                                # long sequences: keep epilogue small
            def body(j, carry):
                emit(j, pl.multiple_of(j * block_t, block_t), block_t)
                return carry
            lax.fori_loop(0, n_full, body, 0)
        if ragged:
            j = num_t_blocks - 1
            emit(j, j * block_t, seq_len - j * block_t)


def simple_attention_layer(lstm_output, w, b, *, block_b=None, block_t=None):
    """lstm_output: (B, T, D); w: (1, D) (PyTorch nn.Linear weight); b: scalar."""
    B, T, D = lstm_output.shape
    assert w.shape == (1, D)
    itemsize = jnp.dtype(lstm_output.dtype).itemsize

    try:
        phys_vmem = int(pltpu.get_tpu_info().vmem_capacity_bytes)
    except Exception:
        phys_vmem = 64 * 1024 * 1024     # conservative: v7x has 64 MiB per TC

    # ---- batch tile ---------------------------------------------------------
    if block_b is None:
        if B <= 8:
            block_b = B                  # block dim == full dim satisfies (8,128)
        else:
            # multiple of 8 and >= 2 batch tiles so both v7x cores get work.
            block_b = min(64, max(8, ((B // 2) // 8) * 8))
    nb = pl.cdiv(B, block_b)

    # ---- time tile: target a few MiB of x per block, prefer a divisor of T ---
    target_block_bytes = (8 if phys_vmem >= 100 * 1024 * 1024 else 4) * 1024 * 1024
    if block_t is None:
        bt_cap = max(8, target_block_bytes // max(1, block_b * D * itemsize))
        if bt_cap >= T:
            block_t = T
        else:
            bt_cap = (bt_cap // 8) * 8
            lo = max(8, bt_cap // 2, bt_cap - 8 * 256)
            block_t = 0
            for cand in range(bt_cap, lo - 1, -8):
                if T % cand == 0:
                    block_t = cand
                    break
            if block_t == 0:
                block_t = bt_cap         # ragged -> host zero-pad below
    elif block_t != T and block_t % 8 != 0:
        block_t = ((block_t + 7) // 8) * 8
    block_t = min(block_t, T)

    nt = pl.cdiv(T, block_t)
    t_pad = nt * block_t

    x_in = lstm_output
    if t_pad != T:
        # Zero-pad on the host: keeps the kernel free of per-step D-wide masks
        # (only the (Bt,Tt) score mask is needed in-kernel).
        x_in = jnp.pad(lstm_output, ((0, 0), (0, t_pad - T), (0, 0)))

    w2d = jnp.asarray(w)
    b1d = jnp.reshape(jnp.asarray(b, dtype=jnp.float32), (1,))

    kernel = functools.partial(_attention_kernel, seq_len=T, block_t=block_t,
                               num_t_blocks=nt)

    # ---- VMEM budget: derived from actual tiles, capped by physical VMEM ----
    vmem_need = (
        2 * block_b * _round_up(block_t, 8) * _round_up(D, 128) * itemsize   # x dbuf
        + _round_up(block_b, 8) * (_round_up(D, 128) + _round_up(T, 128)) * itemsize
        + _round_up(block_b, 8) * _round_up(D, 128) * 4                      # acc
        + nt * _round_up(block_b, 8) * _round_up(block_t, 128) * 4           # p_sc
        + nt * 8 * 128 * 4 + 2 * 8 * 128 * 4                                 # m snaps
        + (2 << 20))                                                         # slack
    vmem_limit = int(max(32 * 1024 * 1024,
                         min(vmem_need, int(0.75 * phys_vmem), 96 * 1024 * 1024)))

    cost = pl.CostEstimate(
        flops=4 * B * T * D,                    # two MXU contractions
        transcendentals=B * T + 4 * B * nt,     # single exp pass + rescales
        bytes_accessed=(B * T * D + B * D + B * T) * itemsize + D * itemsize,
    )

    ctx, attw = pl.pallas_call(
        kernel,
        out_shape=(
            jax.ShapeDtypeStruct((B, D), lstm_output.dtype),
            jax.ShapeDtypeStruct((B, T), lstm_output.dtype),
        ),
        grid_spec=pltpu.PrefetchScalarGridSpec(
            num_scalar_prefetch=0,
            grid=(nb, nt),
            in_specs=[
                # x: streamed (Bt, Tt, D) tiles, double-buffered by Pallas.
                pl.BlockSpec((block_b, block_t, D), lambda bi, ti: (bi, ti, 0)),
                # w: grid-invariant -> DMA'd once, stays VMEM-resident.
                pl.BlockSpec((1, D), lambda bi, ti: (0, 0)),
                # bias: scalar in SMEM.
                pl.BlockSpec(memory_space=pltpu.MemorySpace.SMEM),
            ],
            out_specs=(
                # t-invariant output blocks: VMEM-resident across the time axis,
                # written back once per batch tile, lane-dense (D resp. full T).
                pl.BlockSpec((block_b, D), lambda bi, ti: (bi, 0)),
                pl.BlockSpec((block_b, T), lambda bi, ti: (bi, 0)),
            ),
            scratch_shapes=[
                pltpu.VMEM((block_b, 1), jnp.float32),             # running max
                pltpu.VMEM((block_b, 1), jnp.float32),             # running denom
                pltpu.VMEM((block_b, D), jnp.float32),             # f32 ctx acc
                pltpu.VMEM((nt, block_b, block_t), jnp.float32),   # unnormalized p
                pltpu.VMEM((nt, block_b, 1), jnp.float32),         # max snapshots
            ],
        ),
        compiler_params=pltpu.CompilerParams(
            dimension_semantics=("parallel", "arbitrary"),
            vmem_limit_bytes=vmem_limit,
        ),
        cost_estimate=cost,
    )(x_in, w2d, b1d)
    return ctx, attw


def reference(lstm_output, w, b):
    scores = jnp.einsum("btd,kd->btk", lstm_output, w)[..., 0] + b   # (B, T)
    attw = jax.nn.softmax(scores, axis=1)
    ctx = jnp.einsum("bt,btd->bd", attw, lstm_output)
    return ctx, attw


if __name__ == "__main__":
    key = jax.random.PRNGKey(0)
    k_x, k_w, k_b = jax.random.split(key, 3)

    # --- test 1: module-sized shapes (batch=2, seq=8, hidden=32 -> D=64) -----
    batch, seq, hidden = 2, 8, 32
    D = 2 * hidden                        # nn.Linear(hidden_size * 2, 1)
    lstm_output = jax.random.normal(k_x, (batch, seq, D), dtype=jnp.float32)
    bound = 1.0 / jnp.sqrt(jnp.float32(D))
    w = jax.random.uniform(k_w, (1, D), jnp.float32, -bound, bound)
    b = jax.random.uniform(k_b, (), jnp.float32, -bound, bound)

    ctx, attw = simple_attention_layer(lstm_output, w, b)
    jax.block_until_ready((ctx, attw))
    ctx_r, attw_r = reference(lstm_output, w, b)
    assert ctx.shape == (batch, D) and attw.shape == (batch, seq)
    assert jnp.allclose(ctx, ctx_r, atol=1e-4, rtol=1e-4)
    assert jnp.allclose(attw, attw_r, atol=1e-4, rtol=1e-4)
    assert jnp.allclose(jnp.sum(attw, axis=1), 1.0, atol=1e-4)

    # --- test 2: multi time tile + 2 batch tiles (online softmax across tiles)
    B2, T2, D2 = 16, 192, 128
    k1, k2, k3 = jax.random.split(jax.random.PRNGKey(1), 3)
    x2 = jax.random.normal(k1, (B2, T2, D2), jnp.float32)
    w2 = jax.random.uniform(k2, (1, D2), jnp.float32, -0.1, 0.1)
    b2 = jax.random.uniform(k3, (), jnp.float32, -0.1, 0.1)
    c2, a2 = simple_attention_layer(x2, w2, b2, block_b=8, block_t=64)
    jax.block_until_ready((c2, a2))
    c2r, a2r = reference(x2, w2, b2)
    assert jnp.allclose(c2, c2r, atol=1e-4, rtol=1e-4)
    assert jnp.allclose(a2, a2r, atol=1e-4, rtol=1e-4)

    # --- test 3: ragged T (host zero-pad + in-kernel score mask) -------------
    B3, T3, D3 = 4, 200, 64
    k4, k5, k6 = jax.random.split(jax.random.PRNGKey(2), 3)
    x3 = jax.random.normal(k4, (B3, T3, D3), jnp.float32)
    w3 = jax.random.uniform(k5, (1, D3), jnp.float32, -0.1, 0.1)
    b3 = jax.random.uniform(k6, (), jnp.float32, -0.1, 0.1)
    c3, a3 = simple_attention_layer(x3, w3, b3, block_b=4, block_t=64)
    jax.block_until_ready((c3, a3))
    c3r, a3r = reference(x3, w3, b3)
    assert jnp.allclose(c3, c3r, atol=1e-4, rtol=1e-4)
    assert jnp.allclose(a3, a3r, atol=1e-4, rtol=1e-4)
    assert jnp.allclose(jnp.sum(a3, axis=1), 1.0, atol=1e-4)

    print("KERNEL_OK")
</pallas_src>

<mosaic_0001>
module attributes {stable_mosaic.version = 11 : i64} {
  func.func @_attention_kernel(%arg0: i32, %arg1: i32, %arg2: memref<2x8x64xf32, #tpu.memory_space<vmem>>, %arg3: memref<1x64xf32, #tpu.memory_space<vmem>>, %arg4: memref<1xf32, #tpu.memory_space<smem>>, %arg5: memref<2x64xf32, #tpu.memory_space<vmem>>, %arg6: memref<2x8xf32, #tpu.memory_space<vmem>>, %arg7: memref<2x1xf32, #tpu.memory_space<vmem>>, %arg8: memref<2x1xf32, #tpu.memory_space<vmem>>, %arg9: memref<2x64xf32, #tpu.memory_space<vmem>>, %arg10: memref<1x2x8xf32, #tpu.memory_space<vmem>>, %arg11: memref<1x2x1xf32, #tpu.memory_space<vmem>>) attributes {dimension_semantics = [#tpu.dimension_semantics<parallel>, #tpu.dimension_semantics<arbitrary>], iteration_bounds = array<i64: 1, 1>, scalar_prefetch = 0 : i64, scratch_operands = 5 : i64, tpu.core_type = #tpu.core_type<tc>, window_params = [{transform_indices = @transform_0, window_bounds = array<i64: 2, 8, 64>}, {pipeline_mode = #tpu.pipeline_mode<synchronous>, transform_indices = @transform_1, window_bounds = array<i64: 1, 64>}, {transform_indices = @transform_2, window_bounds = array<i64: 1>}, {transform_indices = @transform_3, window_bounds = array<i64: 2, 64>}, {transform_indices = @transform_4, window_bounds = array<i64: 2, 8>}]} {
    %c0_i32 = arith.constant 0 : i32
    %0 = arith.cmpi eq, %arg1, %c0_i32 : i32
    %1 = arith.extui %0 : i1 to i32
    %c0_i32_0 = arith.constant 0 : i32
    %2 = arith.cmpi ne, %1, %c0_i32_0 : i32
    scf.if %2 {
      %cst_27 = arith.constant 0xFF800000 : f32
      %48 = vector.broadcast %cst_27 : f32 to vector<2x1xf32>
      %c0_28 = arith.constant 0 : index
      %c0_29 = arith.constant 0 : index
      %49 = vector.load %arg7[%c0_28, %c0_29] : memref<2x1xf32, #tpu.memory_space<vmem>>, vector<2x1xf32>
      tpu.vector_store %arg7[%c0_28, %c0_29], %48 {strides = array<i32>} : memref<2x1xf32, #tpu.memory_space<vmem>>, vector<2x1xf32>,
      %cst_30 = arith.constant 0.000000e+00 : f32
      %50 = vector.broadcast %cst_30 : f32 to vector<2x1xf32>
      %c0_31 = arith.constant 0 : index
      %c0_32 = arith.constant 0 : index
      %51 = vector.load %arg8[%c0_31, %c0_32] : memref<2x1xf32, #tpu.memory_space<vmem>>, vector<2x1xf32>
      tpu.vector_store %arg8[%c0_31, %c0_32], %50 {strides = array<i32>} : memref<2x1xf32, #tpu.memory_space<vmem>>, vector<2x1xf32>,
      %cst_33 = arith.constant 0.000000e+00 : f32
      %52 = vector.broadcast %cst_33 : f32 to vector<2x64xf32>
      %c0_34 = arith.constant 0 : index
      %c0_35 = arith.constant 0 : index
      %53 = vector.load %arg9[%c0_34, %c0_35] : memref<2x64xf32, #tpu.memory_space<vmem>>, vector<2x64xf32>
      tpu.vector_store %arg9[%c0_34, %c0_35], %52 {strides = array<i32>} : memref<2x64xf32, #tpu.memory_space<vmem>>, vector<2x64xf32>,
    } else {
    }
    %c0 = arith.constant 0 : index
    %c0_1 = arith.constant 0 : index
    %c0_2 = arith.constant 0 : index
    %3 = vector.load %arg2[%c0, %c0_1, %c0_2] : memref<2x8x64xf32, #tpu.memory_space<vmem>>, vector<2x8x64xf32>
    %c0_3 = arith.constant 0 : index
    %c0_4 = arith.constant 0 : index
    %4 = vector.load %arg3[%c0_3, %c0_4] : memref<1x64xf32, #tpu.memory_space<vmem>>, vector<1x64xf32>
    %c0_5 = arith.constant 0 : index
    %5 = memref.load %arg4[%c0_5] : memref<1xf32, #tpu.memory_space<smem>>
    %6 = vector.shape_cast %4 : vector<1x64xf32> to vector<1x1x64xf32>
    %7 = vector.shape_cast %6 : vector<1x1x64xf32> to vector<1x1x64xf32>
    %8 = vector.broadcast %7 : vector<1x1x64xf32> to vector<2x1x64xf32>
    "tpu.trace_start"() <{level = 10 : i32, message = "bqd,bkd->bqk"}> : () -> ()
    %cst = arith.constant dense<0.000000e+00> : vector<2x1x8xf32>
    %9 = tpu.matmul %8, %3, %cst {dimension_numbers = #tpu.dot_dimension_numbers<[2], [2], [1], [1], [0, 0, 0, 1, 1, 1], [0], [0]>} : vector<2x1x64xf32>, vector<2x8x64xf32>, vector<2x1x8xf32> -> vector<2x1x8xf32>
    "tpu.trace_stop"() : () -> ()
    %10 = vector.shape_cast %9 : vector<2x1x8xf32> to vector<2x8xf32>
    %11 = vector.broadcast %5 : f32 to vector<2x8xf32>
    %12 = arith.addf %10, %11 : vector<2x8xf32>
    %c0_6 = arith.constant 0 : index
    %c0_7 = arith.constant 0 : index
    %13 = vector.load %arg7[%c0_6, %c0_7] : memref<2x1xf32, #tpu.memory_space<vmem>>, vector<2x1xf32>
    %cst_8 = arith.constant dense<0xFF800000> : vector<2xf32>
    %14 = vector.multi_reduction <maximumf>, %12, %cst_8 [1] : vector<2x8xf32> to vector<2xf32>
    %15 = vector.shape_cast %14 : vector<2xf32> to vector<2x1xf32>
    %16 = arith.maximumf %13, %15 : vector<2x1xf32>
    %17 = arith.subf %13, %16 : vector<2x1xf32>
    %18 = math.exp %17 : vector<2x1xf32>
    %19 = vector.broadcast %16 : vector<2x1xf32> to vector<2x8xf32>
    %20 = arith.subf %12, %19 : vector<2x8xf32>
    %21 = math.exp %20 : vector<2x8xf32>
    %c0_9 = arith.constant 0 : index
    %c0_10 = arith.constant 0 : index
    %22 = vector.load %arg8[%c0_9, %c0_10] : memref<2x1xf32, #tpu.memory_space<vmem>>, vector<2x1xf32>
    %23 = arith.mulf %18, %22 : vector<2x1xf32>
    %cst_11 = arith.constant dense<0.000000e+00> : vector<2xf32>
    %24 = vector.multi_reduction <add>, %21, %cst_11 [1] : vector<2x8xf32> to vector<2xf32>
    %25 = vector.shape_cast %24 : vector<2xf32> to vector<2x1xf32>
    %26 = arith.addf %23, %25 : vector<2x1xf32>
    %c0_12 = arith.constant 0 : index
    %c0_13 = arith.constant 0 : index
    %27 = vector.load %arg8[%c0_12, %c0_13] : memref<2x1xf32, #tpu.memory_space<vmem>>, vector<2x1xf32>
    tpu.vector_store %arg8[%c0_12, %c0_13], %26 {strides = array<i32>} : memref<2x1xf32, #tpu.memory_space<vmem>>, vector<2x1xf32>,
    %c0_14 = arith.constant 0 : index
    %c0_15 = arith.constant 0 : index
    %28 = vector.load %arg7[%c0_14, %c0_15] : memref<2x1xf32, #tpu.memory_space<vmem>>, vector<2x1xf32>
    tpu.vector_store %arg7[%c0_14, %c0_15], %16 {strides = array<i32>} : memref<2x1xf32, #tpu.memory_space<vmem>>, vector<2x1xf32>,
    %29 = arith.index_cast %arg1 : i32 to index
    %c0_16 = arith.constant 0 : index
    %c0_17 = arith.constant 0 : index
    %30 = vector.load %arg10[%29, %c0_16, %c0_17] : memref<1x2x8xf32, #tpu.memory_space<vmem>>, vector<1x2x8xf32>
    %31 = vector.shape_cast %30 : vector<1x2x8xf32> to vector<2x8xf32>
    %32 = vector.shape_cast %21 : vector<2x8xf32> to vector<1x2x8xf32>
    tpu.vector_store %arg10[%29, %c0_16, %c0_17], %32 {strides = array<i32>} : memref<1x2x8xf32, #tpu.memory_space<vmem>>, vector<1x2x8xf32>,
    %33 = arith.index_cast %arg1 : i32 to index
    %c0_18 = arith.constant 0 : index
    %c0_19 = arith.constant 0 : index
    %34 = vector.load %arg11[%33, %c0_18, %c0_19] : memref<1x2x1xf32, #tpu.memory_space<vmem>>, vector<1x2x1xf32>
    %35 = vector.shape_cast %34 : vector<1x2x1xf32> to vector<2x1xf32>
    %36 = vector.shape_cast %16 : vector<2x1xf32> to vector<1x2x1xf32>
    tpu.vector_store %arg11[%33, %c0_18, %c0_19], %36 {strides = array<i32>} : memref<1x2x1xf32, #tpu.memory_space<vmem>>, vector<1x2x1xf32>,
    %37 = vector.shape_cast %21 : vector<2x8xf32> to vector<2x1x8xf32>
    "tpu.trace_start"() <{level = 10 : i32, message = "bqk,bkd->bqd"}> : () -> ()
    %cst_20 = arith.constant dense<0.000000e+00> : vector<2x1x64xf32>
    %38 = tpu.matmul %37, %3, %cst_20 {dimension_numbers = #tpu.dot_dimension_numbers<[2], [1], [1], [2], [0, 0, 0, 1, 1, 2], [0], [0]>} : vector<2x1x8xf32>, vector<2x8x64xf32>, vector<2x1x64xf32> -> vector<2x1x64xf32>
    "tpu.trace_stop"() : () -> ()
    %c0_21 = arith.constant 0 : index
    %c0_22 = arith.constant 0 : index
    %39 = vector.load %arg9[%c0_21, %c0_22] : memref<2x64xf32, #tpu.memory_space<vmem>>, vector<2x64xf32>
    %40 = vector.broadcast %18 : vector<2x1xf32> to vector<2x64xf32>
    %41 = arith.mulf %40, %39 : vector<2x64xf32>
    %42 = vector.shape_cast %38 : vector<2x1x64xf32> to vector<2x64xf32>
    %43 = arith.addf %41, %42 : vector<2x64xf32>
    %c0_23 = arith.constant 0 : index
    %c0_24 = arith.constant 0 : index
    %44 = vector.load %arg9[%c0_23, %c0_24] : memref<2x64xf32, #tpu.memory_space<vmem>>, vector<2x64xf32>
    tpu.vector_store %arg9[%c0_23, %c0_24], %43 {strides = array<i32>} : memref<2x64xf32, #tpu.memory_space<vmem>>, vector<2x64xf32>,
    %c0_i32_25 = arith.constant 0 : i32
    %45 = arith.cmpi eq, %arg1, %c0_i32_25 : i32
    %46 = arith.extui %45 : i1 to i32
    %c0_i32_26 = arith.constant 0 : i32
    %47 = arith.cmpi ne, %46, %c0_i32_26 : i32
    scf.if %47 {
      %c0_27 = arith.constant 0 : index
      %c0_28 = arith.constant 0 : index
      %48 = vector.load %arg8[%c0_27, %c0_28] : memref<2x1xf32, #tpu.memory_space<vmem>>, vector<2x1xf32>
      %49 = tpu.reciprocal %48 {approx = true} : vector<2x1xf32> -> vector<2x1xf32>
      %50 = arith.mulf %48, %49 : vector<2x1xf32>
      %cst_29 = arith.constant 2.000000e+00 : f32
      %51 = vector.broadcast %cst_29 : f32 to vector<2x1xf32>
      %52 = arith.subf %51, %50 : vector<2x1xf32>
      %53 = arith.mulf %49, %52 : vector<2x1xf32>
      %c0_30 = arith.constant 0 : index
      %c0_31 = arith.constant 0 : index
      %54 = vector.load %arg7[%c0_30, %c0_31] : memref<2x1xf32, #tpu.memory_space<vmem>>, vector<2x1xf32>
      %c0_32 = arith.constant 0 : index
      %c0_33 = arith.constant 0 : index
      %55 = vector.load %arg9[%c0_32, %c0_33] : memref<2x64xf32, #tpu.memory_space<vmem>>, vector<2x64xf32>
      %56 = vector.broadcast %53 : vector<2x1xf32> to vector<2x64xf32>
      %57 = arith.mulf %55, %56 : vector<2x64xf32>
      %c0_34 = arith.constant 0 : index
      %c0_35 = arith.constant 0 : index
      %58 = vector.load %arg5[%c0_34, %c0_35] : memref<2x64xf32, #tpu.memory_space<vmem>>, vector<2x64xf32>
      tpu.vector_store %arg5[%c0_34, %c0_35], %57 {strides = array<i32>} : memref<2x64xf32, #tpu.memory_space<vmem>>, vector<2x64xf32>,
      %c0_36 = arith.constant 0 : index
      %c0_37 = arith.constant 0 : index
      %c0_38 = arith.constant 0 : index
      %59 = vector.load %arg11[%c0_36, %c0_37, %c0_38] : memref<1x2x1xf32, #tpu.memory_space<vmem>>, vector<1x2x1xf32>
      %60 = vector.shape_cast %59 : vector<1x2x1xf32> to vector<2x1xf32>
      %61 = arith.subf %60, %54 : vector<2x1xf32>
      %62 = math.exp %61 : vector<2x1xf32>
      %63 = arith.mulf %62, %53 : vector<2x1xf32>
      %c0_39 = arith.constant 0 : index
      %c0_40 = arith.constant 0 : index
      %c0_41 = arith.constant 0 : index
      %64 = vector.load %arg10[%c0_39, %c0_40, %c0_41] : memref<1x2x8xf32, #tpu.memory_space<vmem>>, vector<1x2x8xf32>
      %65 = vector.shape_cast %64 : vector<1x2x8xf32> to vector<2x8xf32>
      %66 = vector.broadcast %63 : vector<2x1xf32> to vector<2x8xf32>
      %67 = arith.mulf %65, %66 : vector<2x8xf32>
      %c0_42 = arith.constant 0 : index
      %c0_43 = arith.constant 0 : index
      %68 = vector.load %arg6[%c0_42, %c0_43] : memref<2x8xf32, #tpu.memory_space<vmem>>, vector<2x8xf32>
      tpu.vector_store %arg6[%c0_42, %c0_43], %67 {strides = array<i32>} : memref<2x8xf32, #tpu.memory_space<vmem>>, vector<2x8xf32>,
    } else {
    }
    return
  }
  func.func @transform_0(%arg0: i32, %arg1: i32) -> (i32, i32, i32) {
    %c0_i32 = arith.constant 0 : i32
    %c0_i32_0 = arith.constant 0 : i32
    return %arg0, %arg1, %c0_i32 : i32, i32, i32
  }
  func.func @transform_1(%arg0: i32, %arg1: i32) -> (i32, i32) {
    %c0_i32 = arith.constant 0 : i32
    %c0_i32_0 = arith.constant 0 : i32
    %c0_i32_1 = arith.constant 0 : i32
    return %c0_i32, %c0_i32_0 : i32, i32
  }
  func.func @transform_2(%arg0: i32, %arg1: i32) -> i32 {
    %c0_i32 = arith.constant 0 : i32
    %c0_i32_0 = arith.constant 0 : i32
    return %c0_i32 : i32
  }
  func.func @transform_3(%arg0: i32, %arg1: i32) -> (i32, i32) {
    %c0_i32 = arith.constant 0 : i32
    %c0_i32_0 = arith.constant 0 : i32
    return %arg0, %c0_i32 : i32, i32
  }
  func.func @transform_4(%arg0: i32, %arg1: i32) -> (i32, i32) {
    %c0_i32 = arith.constant 0 : i32
    %c0_i32_0 = arith.constant 0 : i32
    return %arg0, %c0_i32 : i32, i32
  }
}

</mosaic_0001>

<llo_original>
// kernel: tpu_custom_call.1
$region0: #{tpu_custom_call.1}
  #allocation0 [shape = 'u32[]', space=smem, size = 0x4, offset = 0x4, fixed_abs, tag = 'smem constant byte address 0x4 - core index']
  #allocation1 [shape = 'u32[144,128]{1,0:T(1,128)}', space=vmem, size = 0x12000, scoped, tag = 'internal scratch']
  #allocation2 [shape = 'f32[2,1]{1,0:T(2,128)}', space=vmem, size = 0x400, scoped, tag = 'scratch operand']
  #allocation3 [shape = 'f32[2,1]{1,0:T(2,128)}', space=vmem, size = 0x400, scoped, tag = 'scratch operand']
  #allocation4 [shape = 'f32[2,64]{1,0:T(2,128)}', space=vmem, size = 0x400, scoped, tag = 'scratch operand']
  #allocation5 [shape = 'f32[1,2,8]{2,1,0:T(2,128)}', space=vmem, size = 0x400, scoped, tag = 'scratch operand']
  #allocation6 [shape = 'f32[1,2,1]{2,1,0:T(2,128)}', space=vmem, size = 0x400, scoped, tag = 'scratch operand']
  #allocation7 [shape = 'f32[1]{0:T(128)S(6)}', space=smem, size = 0x200, scoped, tag = 'scoped memory for tpu_custom_call.1']
  %s0 = inlined_call_operand.hbm [shape: f32[2,8,64], index: 0, kind: input, shape index: {}]
  %s1 = inlined_call_operand.vmem [shape: f32[1,64], index: 1, kind: input, shape index: {}]
  %s2 = inlined_call_operand.<no memory space> [shape: f32[1], index: 2, kind: input, shape index: {}]
  %s3 = inlined_call_operand.hbm [shape: f32[2,64], index: 3, kind: output, shape index: {0}]
  %s4 = inlined_call_operand.hbm [shape: f32[2,8], index: 4, kind: output, shape index: {1}]
  %5 = xla_tuple %s3, %s4
  %s6 = sld [smem:[#allocation0]]
  $region42: #{tpu_custom_call.1} parent=0
    _
  %s8 = ssub.s32 1, %s6
  %s9 = scalar_select 0, %s8, %s6
  %10 = sst [smem:[#allocation7]] %s2
  $region1: #{tpu_custom_call.1} parent=0
    #allocation8 [shape = 'u8[8192]{0}', space=vmem, size = 0x2000, scoped, tag = 'input window, operand 0, single buffered']
    #allocation9 [shape = 's32[1]{0}', space=sflag, size = 0x4, scoped, tag = 'scoped memory for tpu_custom_call.1']
    #allocation10 [shape = 's32[1]{0}', space=sflag, size = 0x4, scoped, tag = 'scoped memory for tpu_custom_call.1']
    #allocation11 [shape = 'u8[1024]{0}', space=vmem, size = 0x400, scoped, tag = 'output window, operand 0, single buffered']
    #allocation12 [shape = 'u8[1024]{0}', space=vmem, size = 0x400, scoped, tag = 'output window, operand 1, single buffered']
    #allocation13 [shape = 's32[1]{0}', space=sflag, size = 0x4, scoped, tag = 'scoped memory for tpu_custom_call.1']
    %11 = vsyncpa [#allocation9], 0
    %12 = vsyncpa [#allocation10], 0
    %13 = vsyncpa [#allocation13], 0
    // Predicated region
    $region2: #{tpu_custom_call.1} parent=1 // pred_check
      _
    $region3: #{tpu_custom_call.1} parent=1 // pred_check_branch
      %15 = sbr.rel (0) target = $region5
    $region4: #{tpu_custom_call.1} parent=1 // pred_region
      %s17 = ssub.s32 256, 256
      %18 = vsyncadd [#allocation9], %s17
      %s19 = sshll.u32 [#allocation8], 4
      %s20 = int_to_ptr.vmem [resolvable:$true] %s19
      %25 = dma.hbm_to_vmem [thread:$0]  %s0, 256, %s20, [#allocation9], 128, 128, 8
    $region5: #{tpu_custom_call.1} parent=1 // pred_fallthru
      _
    // Predicated region
    $region6: #{tpu_custom_call.1} parent=1 // pred_check
      _
    $region7: #{tpu_custom_call.1} parent=1 // pred_check_branch
      %27 = sbr.rel (0) target = $region9
    $region8: #{tpu_custom_call.1} parent=1 // pred_region
      _
    $region9: #{tpu_custom_call.1} parent=1 // pred_fallthru
      _
    // Predicated region
    $region10: #{tpu_custom_call.1} parent=1 // pred_check
      _
    $region11: #{tpu_custom_call.1} parent=1 // pred_check_branch
      %29 = sbr.rel (0) target = $region13
    $region12: #{tpu_custom_call.1} parent=1 // pred_region
      _
    $region13: #{tpu_custom_call.1} parent=1 // pred_fallthru
      _
    // Predicated region
    $region14: #{tpu_custom_call.1} parent=1 // pred_check
      _
    $region15: #{tpu_custom_call.1} parent=1 // pred_check_branch
      %31 = sbr.rel (0) target = $region17
    $region16: #{tpu_custom_call.1} parent=1 // pred_region
      %32 = dma.done [#allocation9], 256
    $region17: #{tpu_custom_call.1} parent=1 // pred_fallthru
      _
    %p33 = scmp.eq.s32.totalorder 0, 0
    // Predicated region
    $region18: #{tpu_custom_call.1} parent=1 // pred_check
      %p34 = pneg %p33
    $region19: #{tpu_custom_call.1} parent=1 // pred_check_branch
      %36 = sbr.rel (%p34) target = $region21
    $region20: #{tpu_custom_call.1} parent=1 // pred_region
      %vm37 = vcmask 1024
      %38 = vst.msk [vmem:[#allocation2] sm:$0x3] %vm37, -inf
      %39 = vst.msk [vmem:[#allocation3] sm:$0x3] %vm37, 0.0
      %vm40 = vcmask 517120
      %41 = vst.msk [vmem:[#allocation4] sm:$0x3] %vm40, 0.0
    $region21: #{tpu_custom_call.1} parent=1 // pred_fallthru
      _
    %v42 = vld [vmem:[#allocation8] sm:$0xff]
    %v43 = vld [vmem:[#allocation8 + $0x8] sm:$0xff]
    %v44 = vld [vmem:[%s1] sm:$0x1]
    %s45 = sld [smem:[#allocation7]]
    %vm46 = vcmask 523264
    %v48 = vsel %vm46, %v44, 0
    %v51 = vsel %vm46, %v42, 0
    %53 = vmatprep.subr.mxu0 0.0
    %54 = vmatpush1.xpose.msra.mxu0 %v51
    %55 = vmatprep.subr.mxu0 0.0
    %56 = vmatpush1.xpose.msra.mxu0 0.0
    %57 = vmatprep.subr.mxu0 0.0
    %58 = vmatpush1.xpose.msra.mxu0 0.0
    %59 = vmatprep.subr.mxu0 0.0
    %60 = vmatpush1.xpose.msra.mxu0 0.0
    %61 = vmatprep.subr.mxu0 0.0
    %62 = vmatpush1.xpose.msra.mxu0 0.0
    %63 = vmatprep.subr.mxu0 0.0
    %64 = vmatpush1.xpose.msra.mxu0 0.0
    %65 = vmatprep.subr.mxu0 0.0
    %66 = vmatpush1.xpose.msra.mxu0 0.0
    %67 = vmatprep.subr.mxu0 0.0
    %68 = vmatpush1.xpose.msra.mxu0 0.0
    %69 = vmatprep.subr.mxu0 0.0
    %70 = vmatpush1.xpose.msra.mxu0 0.0
    %71 = vmatprep.subr.mxu0 0.0
    %72 = vmatpush1.xpose.msra.mxu0 0.0
    %73 = vmatprep.subr.mxu0 0.0
    %74 = vmatpush1.xpose.msra.mxu0 0.0
    %75 = vmatprep.subr.mxu0 0.0
    %76 = vmatpush1.xpose.msra.mxu0 0.0
    %77 = vmatprep.subr.mxu0 0.0
    %78 = vmatpush1.xpose.msra.mxu0 0.0
    %79 = vmatprep.subr.mxu0 0.0
    %80 = vmatpush1.xpose.msra.mxu0 0.0
    %81 = vmatprep.subr.mxu0 0.0
    %82 = vmatpush1.xpose.msra.mxu0 0.0
    %83 = vmatprep.subr.mxu0 0.0
    %84 = vmatpush1.xpose.msra.mxu0 0.0
    %85 = vmatprep.subr.mxu0 0.0
    %86 = vmatpush1.xpose.msra.mxu0 0.0
    %87 = vmatprep.subr.mxu0 0.0
    %88 = vmatpush1.xpose.msra.mxu0 0.0
    %89 = vmatprep.subr.mxu0 0.0
    %90 = vmatpush1.xpose.msra.mxu0 0.0
    %91 = vmatprep.subr.mxu0 0.0
    %92 = vmatpush1.xpose.msra.mxu0 0.0
    %93 = vmatprep.subr.mxu0 0.0
    %94 = vmatpush1.xpose.msra.mxu0 0.0
    %95 = vmatprep.subr.mxu0 0.0
    %96 = vmatpush1.xpose.msra.mxu0 0.0
    %97 = vmatprep.subr.mxu0 0.0
    %98 = vmatpush1.xpose.msra.mxu0 0.0
    %99 = vmatprep.subr.mxu0 0.0
    %100 = vmatpush1.xpose.msra.mxu0 0.0
    %101 = vmatprep.subr.mxu0 0.0
    %102 = vmatpush1.xpose.msra.mxu0 0.0
    %103 = vmatprep.subr.mxu0 0.0
    %104 = vmatpush1.xpose.msra.mxu0 0.0
    %105 = vmatprep.subr.mxu0 0.0
    %106 = vmatpush1.xpose.msra.mxu0 0.0
    %107 = vmatprep.subr.mxu0 0.0
    %108 = vmatpush1.xpose.msra.mxu0 0.0
    %109 = vmatprep.subr.mxu0 0.0
    %110 = vmatpush1.xpose.msra.mxu0 0.0
    %111 = vmatprep.subr.mxu0 0.0
    %112 = vmatpush1.xpose.msra.mxu0 0.0
    %113 = vmatprep.subr.mxu0 0.0
    %114 = vmatpush1.xpose.msra.mxu0 0.0
    %115 = vmatprep.subr.mxu0 0.0
    %116 = vmatpush1.xpose.msra.mxu0 0.0
    %117 = vmatprep.mubr.f32.mxu0 0.0
    %118 = vmatmul.mubr.f32.gmra.mrb[0].mxu0 %v48
    %v119 = vpop.f32.mrb[0].mxu0
    %v120 = vadd.f32 0.0, %v119
    %v121 = vpop.f32.mrb[0].mxu0
    %122 = vdwg.mxu0
    %v124 = vsel %vm46, %v43, 0
    %126 = vmatprep.subr.mxu0 0.0
    %127 = vmatpush1.xpose.msra.mxu0 %v124
    %128 = vmatprep.subr.mxu0 0.0
    %129 = vmatpush1.xpose.msra.mxu0 0.0
    %130 = vmatprep.subr.mxu0 0.0
    %131 = vmatpush1.xpose.msra.mxu0 0.0
    %132 = vmatprep.subr.mxu0 0.0
    %133 = vmatpush1.xpose.msra.mxu0 0.0
    %134 = vmatprep.subr.mxu0 0.0
    %135 = vmatpush1.xpose.msra.mxu0 0.0
    %136 = vmatprep.subr.mxu0 0.0
    %137 = vmatpush1.xpose.msra.mxu0 0.0
    %138 = vmatprep.subr.mxu0 0.0
    %139 = vmatpush1.xpose.msra.mxu0 0.0
    %140 = vmatprep.subr.mxu0 0.0
    %141 = vmatpush1.xpose.msra.mxu0 0.0
    %142 = vmatprep.subr.mxu0 0.0
    %143 = vmatpush1.xpose.msra.mxu0 0.0
    %144 = vmatprep.subr.mxu0 0.0
    %145 = vmatpush1.xpose.msra.mxu0 0.0
    %146 = vmatprep.subr.mxu0 0.0
    %147 = vmatpush1.xpose.msra.mxu0 0.0
    %148 = vmatprep.subr.mxu0 0.0
    %149 = vmatpush1.xpose.msra.mxu0 0.0
    %150 = vmatprep.subr.mxu0 0.0
    %151 = vmatpush1.xpose.msra.mxu0 0.0
    %152 = vmatprep.subr.mxu0 0.0
    %153 = vmatpush1.xpose.msra.mxu0 0.0
    %154 = vmatprep.subr.mxu0 0.0
    %155 = vmatpush1.xpose.msra.mxu0 0.0
    %156 = vmatprep.subr.mxu0 0.0
    %157 = vmatpush1.xpose.msra.mxu0 0.0
    %158 = vmatprep.subr.mxu0 0.0
    %159 = vmatpush1.xpose.msra.mxu0 0.0
    %160 = vmatprep.subr.mxu0 0.0
    %161 = vmatpush1.xpose.msra.mxu0 0.0
    %162 = vmatprep.subr.mxu0 0.0
    %163 = vmatpush1.xpose.msra.mxu0 0.0
    %164 = vmatprep.subr.mxu0 0.0
    %165 = vmatpush1.xpose.msra.mxu0 0.0
    %166 = vmatprep.subr.mxu0 0.0
    %167 = vmatpush1.xpose.msra.mxu0 0.0
    %168 = vmatprep.subr.mxu0 0.0
    %169 = vmatpush1.xpose.msra.mxu0 0.0
    %170 = vmatprep.subr.mxu0 0.0
    %171 = vmatpush1.xpose.msra.mxu0 0.0
    %172 = vmatprep.subr.mxu0 0.0
    %173 = vmatpush1.xpose.msra.mxu0 0.0
    %174 = vmatprep.subr.mxu0 0.0
    %175 = vmatpush1.xpose.msra.mxu0 0.0
    %176 = vmatprep.subr.mxu0 0.0
    %177 = vmatpush1.xpose.msra.mxu0 0.0
    %178 = vmatprep.subr.mxu0 0.0
    %179 = vmatpush1.xpose.msra.mxu0 0.0
    %180 = vmatprep.subr.mxu0 0.0
    %181 = vmatpush1.xpose.msra.mxu0 0.0
    %182 = vmatprep.subr.mxu0 0.0
    %183 = vmatpush1.xpose.msra.mxu0 0.0
    %184 = vmatprep.subr.mxu0 0.0
    %185 = vmatpush1.xpose.msra.mxu0 0.0
    %186 = vmatprep.subr.mxu0 0.0
    %187 = vmatpush1.xpose.msra.mxu0 0.0
    %188 = vmatprep.subr.mxu0 0.0
    %189 = vmatpush1.xpose.msra.mxu0 0.0
    %190 = vmatprep.mubr.f32.mxu0 0.0
    %191 = vmatmul.mubr.f32.gmra.mrb[0].mxu0 %v48
    %v192 = vpop.f32.mrb[0].mxu0
    %v193 = vadd.f32 0.0, %v192
    %v194 = vpop.f32.mrb[0].mxu0
    %195 = vdwg.mxu0
    %v196 = vstv %s45
    %v197 = vadd.f32 %v120, %v196
    %v198 = vadd.f32 %v193, %v196
    %v199 = vld [vmem:[#allocation2] sm:$0x3]
    %v202 = vrot.slane %v198, 7
    %vm203 = vcmask 1041409
    %v204 = vsel %vm203, %v202, %v197
    %vm206 = vcmask 58368
    %v207 = vsel %vm206, %v204, -inf
    %208 = vmax.xlane.f32.xlu0 %v207
    %v209 = vpop.xlane.xlu0 %208
    %v210 = vmax.f32 %v199, %v209
    %v211 = vsub.f32 %v199, %v210
    %v212 = vmul.f32 %v211, 1.442695
    %v213 = vpow.pop %v212
    %215 = vset.pattern.permute.xlu0 0
    %216 = vperm.xlu0 %215, %v210
    %v217 = vpop.permute.xlu0 %216
    %v218 = vrot.slane %v217, 1
    %v221 = vsub.f32 %v197, %v217
    %v222 = vsub.f32 %v198, %v218
    %v223 = vmul.f32 %v221, 1.442695
    %v224 = vpow.pop %v223
    %v225 = vmul.f32 %v222, 1.442695
    %v226 = vpow.pop %v225
    %v227 = vld [vmem:[#allocation3] sm:$0x3]
    %v228 = vmul.f32 %v213, %v227
    %v231 = vrot.slane %v226, 7
    %v232 = vsel %vm203, %v231, %v224
    %v234 = vsel %vm206, %v232, 0.0
    %235 = vadd.xlane.f32.xlu0 %v234
    %v236 = vpop.xlane.xlu0 %235
    %v237 = vadd.f32 %v228, %v236
    %vm238 = vcmask 1024
    %239 = vst.msk [vmem:[#allocation3] sm:$0x3] %vm238, %v237
    %240 = vst.msk [vmem:[#allocation2] sm:$0x3] %vm238, %v210
    %s241 = smul.u32 0, 2
    %s242 = scalar_lea.vmem [#allocation5], %s241
    %243 = vst.msk [vmem:[%s242] sm:$0x3] %vm206, %v232
    %s244 = scalar_lea.vmem [#allocation6], %s241
    %245 = vst.msk [vmem:[%s244] sm:$0x3] %vm238, %v210
    %vm246 = vcmask 64512
    %v247 = vsel %vm246, %v224, 0
    %249 = vmatprep.subr.mxu0 0.0
    %250 = vmatpush1.msra.mxu0 %v42
    %251 = vmatprep.subr.mxu0 0.0
    %252 = vmatpush1.msra.mxu0 0.0
    %253 = vmatprep.subr.mxu0 0.0
    %254 = vmatpush1.msra.mxu0 0.0
    %255 = vmatprep.subr.mxu0 0.0
    %256 = vmatpush1.msra.mxu0 0.0
    %257 = vmatprep.subr.mxu0 0.0
    %258 = vmatpush1.msra.mxu0 0.0
    %259 = vmatprep.subr.mxu0 0.0
    %260 = vmatpush1.msra.mxu0 0.0
    %261 = vmatprep.subr.mxu0 0.0
    %262 = vmatpush1.msra.mxu0 0.0
    %263 = vmatprep.subr.mxu0 0.0
    %264 = vmatpush1.msra.mxu0 0.0
    %265 = vmatprep.subr.mxu0 0.0
    %266 = vmatpush1.msra.mxu0 0.0
    %267 = vmatprep.subr.mxu0 0.0
    %268 = vmatpush1.msra.mxu0 0.0
    %269 = vmatprep.subr.mxu0 0.0
    %270 = vmatpush1.msra.mxu0 0.0
    %271 = vmatprep.subr.mxu0 0.0
    %272 = vmatpush1.msra.mxu0 0.0
    %273 = vmatprep.subr.mxu0 0.0
    %274 = vmatpush1.msra.mxu0 0.0
    %275 = vmatprep.subr.mxu0 0.0
    %276 = vmatpush1.msra.mxu0 0.0
    %277 = vmatprep.subr.mxu0 0.0
    %278 = vmatpush1.msra.mxu0 0.0
    %279 = vmatprep.subr.mxu0 0.0
    %280 = vmatpush1.msra.mxu0 0.0
    %281 = vmatprep.subr.mxu0 0.0
    %282 = vmatpush1.msra.mxu0 0.0
    %283 = vmatprep.subr.mxu0 0.0
    %284 = vmatpush1.msra.mxu0 0.0
    %285 = vmatprep.subr.mxu0 0.0
    %286 = vmatpush1.msra.mxu0 0.0
    %287 = vmatprep.subr.mxu0 0.0
    %288 = vmatpush1.msra.mxu0 0.0
    %289 = vmatprep.subr.mxu0 0.0
    %290 = vmatpush1.msra.mxu0 0.0
    %291 = vmatprep.subr.mxu0 0.0
    %292 = vmatpush1.msra.mxu0 0.0
    %293 = vmatprep.subr.mxu0 0.0
    %294 = vmatpush1.msra.mxu0 0.0
    %295 = vmatprep.subr.mxu0 0.0
    %296 = vmatpush1.msra.mxu0 0.0
    %297 = vmatprep.subr.mxu0 0.0
    %298 = vmatpush1.msra.mxu0 0.0
    %299 = vmatprep.subr.mxu0 0.0
    %300 = vmatpush1.msra.mxu0 0.0
    %301 = vmatprep.subr.mxu0 0.0
    %302 = vmatpush1.msra.mxu0 0.0
    %303 = vmatprep.subr.mxu0 0.0
    %304 = vmatpush1.msra.mxu0 0.0
    %305 = vmatprep.subr.mxu0 0.0
    %306 = vmatpush1.msra.mxu0 0.0
    %307 = vmatprep.subr.mxu0 0.0
    %308 = vmatpush1.msra.mxu0 0.0
    %309 = vmatprep.subr.mxu0 0.0
    %310 = vmatpush1.msra.mxu0 0.0
    %311 = vmatprep.subr.mxu0 0.0
    %312 = vmatpush1.msra.mxu0 0.0
    %313 = vmatprep.mubr.f32.mxu0 0.0
    %314 = vmatmul.mubr.f32.gmra.mrb[0].mxu0 %v247
    %v315 = vpop.f32.mrb[0].mxu0
    %v316 = vadd.f32 0.0, %v315
    %v317 = vpop.f32.mrb[0].mxu0
    %318 = vdwg.mxu0
    %v319 = vsel %vm246, %v226, 0
    %321 = vmatprep.subr.mxu0 0.0
    %322 = vmatpush1.msra.mxu0 %v43
    %323 = vmatprep.subr.mxu0 0.0
    %324 = vmatpush1.msra.mxu0 0.0
    %325 = vmatprep.subr.mxu0 0.0
    %326 = vmatpush1.msra.mxu0 0.0
    %327 = vmatprep.subr.mxu0 0.0
    %328 = vmatpush1.msra.mxu0 0.0
    %329 = vmatprep.subr.mxu0 0.0
    %330 = vmatpush1.msra.mxu0 0.0
    %331 = vmatprep.subr.mxu0 0.0
    %332 = vmatpush1.msra.mxu0 0.0
    %333 = vmatprep.subr.mxu0 0.0
    %334 = vmatpush1.msra.mxu0 0.0
    %335 = vmatprep.subr.mxu0 0.0
    %336 = vmatpush1.msra.mxu0 0.0
    %337 = vmatprep.subr.mxu0 0.0
    %338 = vmatpush1.msra.mxu0 0.0
    %339 = vmatprep.subr.mxu0 0.0
    %340 = vmatpush1.msra.mxu0 0.0
    %341 = vmatprep.subr.mxu0 0.0
    %342 = vmatpush1.msra.mxu0 0.0
    %343 = vmatprep.subr.mxu0 0.0
    %344 = vmatpush1.msra.mxu0 0.0
    %345 = vmatprep.subr.mxu0 0.0
    %346 = vmatpush1.msra.mxu0 0.0
    %347 = vmatprep.subr.mxu0 0.0
    %348 = vmatpush1.msra.mxu0 0.0
    %349 = vmatprep.subr.mxu0 0.0
    %350 = vmatpush1.msra.mxu0 0.0
    %351 = vmatprep.subr.mxu0 0.0
    %352 = vmatpush1.msra.mxu0 0.0
    %353 = vmatprep.subr.mxu0 0.0
    %354 = vmatpush1.msra.mxu0 0.0
    %355 = vmatprep.subr.mxu0 0.0
    %356 = vmatpush1.msra.mxu0 0.0
    %357 = vmatprep.subr.mxu0 0.0
    %358 = vmatpush1.msra.mxu0 0.0
    %359 = vmatprep.subr.mxu0 0.0
    %360 = vmatpush1.msra.mxu0 0.0
    %361 = vmatprep.subr.mxu0 0.0
    %362 = vmatpush1.msra.mxu0 0.0
    %363 = vmatprep.subr.mxu0 0.0
    %364 = vmatpush1.msra.mxu0 0.0
    %365 = vmatprep.subr.mxu0 0.0
    %366 = vmatpush1.msra.mxu0 0.0
    %367 = vmatprep.subr.mxu0 0.0
    %368 = vmatpush1.msra.mxu0 0.0
    %369 = vmatprep.subr.mxu0 0.0
    %370 = vmatpush1.msra.mxu0 0.0
    %371 = vmatprep.subr.mxu0 0.0
    %372 = vmatpush1.msra.mxu0 0.0
    %373 = vmatprep.subr.mxu0 0.0
    %374 = vmatpush1.msra.mxu0 0.0
    %375 = vmatprep.subr.mxu0 0.0
    %376 = vmatpush1.msra.mxu0 0.0
    %377 = vmatprep.subr.mxu0 0.0
    %378 = vmatpush1.msra.mxu0 0.0
    %379 = vmatprep.subr.mxu0 0.0
    %380 = vmatpush1.msra.mxu0 0.0
    %381 = vmatprep.subr.mxu0 0.0
    %382 = vmatpush1.msra.mxu0 0.0
    %383 = vmatprep.subr.mxu0 0.0
    %384 = vmatpush1.msra.mxu0 0.0
    %385 = vmatprep.mubr.f32.mxu0 0.0
    %386 = vmatmul.mubr.f32.gmra.mrb[0].mxu0 %v319
    %v387 = vpop.f32.mrb[0].mxu0
    %v388 = vadd.f32 0.0, %v387
    %v389 = vpop.f32.mrb[0].mxu0
    %390 = vdwg.mxu0
    %v391 = vld [vmem:[#allocation4] sm:$0x3]
    %393 = vset.pattern.permute.xlu0 0
    %394 = vperm.xlu0 %393, %v213
    %v395 = vpop.permute.xlu0 %394
    %v397 = vmul.f32 %v395, %v391
    %v400 = vrot.slane %v388, 7
    %v401 = vsel %vm203, %v400, %v316
    %v403 = vadd.f32 %v397, %v401
    %vm404 = vcmask 517120
    %405 = vst.msk [vmem:[#allocation4] sm:$0x3] %vm404, %v403
    // Predicated region
    $region22: #{tpu_custom_call.1} parent=1 // pred_check
      %p406 = pneg %p33
    $region23: #{tpu_custom_call.1} parent=1 // pred_check_branch
      %408 = sbr.rel (%p406) target = $region25
    $region24: #{tpu_custom_call.1} parent=1 // pred_region
      %v409 = vld [vmem:[#allocation3] sm:$0x3]
      %v410 = vrcp.pop %v409
      %v411 = vmul.f32 %v409, %v410
      %v412 = vsub.f32 2.0, %v411
      %v413 = vmul.f32 %v410, %v412
      %v414 = vld [vmem:[#allocation2] sm:$0x3]
      %v415 = vld [vmem:[#allocation4] sm:$0x3]
      %417 = vset.pattern.permute.xlu0 0
      %418 = vperm.xlu0 %417, %v413
      %v419 = vpop.permute.xlu0 %418
      %v421 = vmul.f32 %v415, %v419
      %422 = vst.msk [vmem:[#allocation11] sm:$0x3] %vm404, %v421
      %v423 = vld [vmem:[#allocation6] sm:$0x3]
      %v424 = vsub.f32 %v423, %v414
      %v425 = vmul.f32 %v424, 1.442695
      %v426 = vpow.pop %v425
      %v427 = vmul.f32 %v426, %v413
      %v428 = vld [vmem:[#allocation5] sm:$0x3]
      %430 = vset.pattern.permute.xlu0 0
      %431 = vperm.xlu0 %430, %v427
      %v432 = vpop.permute.xlu0 %431
      %v434 = vmul.f32 %v428, %v432
      %435 = vst.msk [vmem:[#allocation12] sm:$0x3] %vm206, %v434
    $region25: #{tpu_custom_call.1} parent=1 // pred_fallthru
      _
    // Predicated region
    $region26: #{tpu_custom_call.1} parent=1 // pred_check
      _
    $region27: #{tpu_custom_call.1} parent=1 // pred_check_branch
      %437 = sbr.rel (0) target = $region29
    $region28: #{tpu_custom_call.1} parent=1 // pred_region
      %s439 = ssub.s32 32, 32
      %440 = vsyncadd [#allocation10], %s439
      %s442 = sshll.u32 [#allocation11], 4
      %s443 = int_to_ptr.vmem [resolvable:$true] %s442
      %445 = dma.vmem_to_hbm [thread:$0]  %s443, 32, %s3, [#allocation10]
    $region29: #{tpu_custom_call.1} parent=1 // pred_fallthru
      _
    // Predicated region
    $region30: #{tpu_custom_call.1} parent=1 // pred_check
      _
    $region31: #{tpu_custom_call.1} parent=1 // pred_check_branch
      %447 = sbr.rel (0) target = $region33
    $region32: #{tpu_custom_call.1} parent=1 // pred_region
      %s449 = ssub.s32 32, 32
      %450 = vsyncadd [#allocation13], %s449
      %s452 = sshll.u32 [#allocation12], 4
      %s453 = int_to_ptr.vmem [resolvable:$true] %s452
      %455 = dma.vmem_to_hbm [thread:$0]  %s453, 32, %s4, [#allocation13]
    $region33: #{tpu_custom_call.1} parent=1 // pred_fallthru
      _
    // Predicated region
    $region34: #{tpu_custom_call.1} parent=1 // pred_check
      _
    $region35: #{tpu_custom_call.1} parent=1 // pred_check_branch
      %457 = sbr.rel (0) target = $region37
    $region36: #{tpu_custom_call.1} parent=1 // pred_region
      %458 = dma.done [#allocation10], 32
    $region37: #{tpu_custom_call.1} parent=1 // pred_fallthru
      _
    // Predicated region
    $region38: #{tpu_custom_call.1} parent=1 // pred_check
      _
    $region39: #{tpu_custom_call.1} parent=1 // pred_check_branch
      %460 = sbr.rel (0) target = $region41
    $region40: #{tpu_custom_call.1} parent=1 // pred_region
      %461 = dma.done [#allocation13], 32
    $region41: #{tpu_custom_call.1} parent=1 // pred_fallthru
      _
    %462 = vsyncpa [#allocation9], 1
    %463 = vsyncpa [#allocation10], 1
    %464 = vsyncpa [#allocation13], 1

</llo_original>
